<compile_context>
chip_gen: v5e
topology: v5e:2x2
jax: 0.10.0
libtpu: 0.0.40
codegen_flags: <defaults>
</compile_context>

<pallas_src>
import functools
import math

import jax
import jax.numpy as jnp
from jax.experimental import pallas as pl
from jax.experimental.pallas import tpu as pltpu  # noqa: F401  (TPU backend)


def _round_up(x, m):
    return ((x + m - 1) // m) * m


# ---------------------------------------------------------------------------
# Kernel: single invocation (no grid), whole problem resident in VMEM.
#   x_ref  : (B, N, F)  inputs, f32 (cast to compute dtype in-kernel)
#   a1_ref : (N, N)     adj * mask1 (pre-fused, compute dtype)
#   a2_ref : (N, N)     adj * mask2 (pre-fused, compute dtype)
#   w1_ref : (F, H)     un-replicated layer-1 weight (compute dtype)
#   w2_ref : (H, O)     un-replicated layer-2 weight (compute dtype)
#   b_ref  : (2, L)     row 0 = b1 zero-padded to L, row 1 = tile(b2, B) padded
#   out_ref: (N, Op)    lane-dense packed output, column index b*O + o, f32
# ---------------------------------------------------------------------------
def gcn_kernel(x_ref, a1_ref, a2_ref, w1_ref, w2_ref, b_ref, out_ref,
               *, B, H, O, Op):
    cd = w1_ref.dtype
    N = a1_ref.shape[0]
    a1 = a1_ref[...]
    a2 = a2_ref[...]
    w1 = w1_ref[...]
    w2 = w2_ref[...]
    b1 = b_ref[0:1, :H]           # (1, H)  f32
    b2 = b_ref[1:2, :Op]          # (1, Op) f32 (padded tail is exactly zero)

    # ---- layer 1 + layer-2 X@W, per batch (statically unrolled) ----
    slabs = []
    for b in range(B):
        s1 = jnp.dot(x_ref[b].astype(cd), w1,
                     preferred_element_type=jnp.float32)          # (N, H) f32
        h = jnp.dot(a1, s1.astype(cd),
                    preferred_element_type=jnp.float32) + b1      # (N, H) f32
        h = jnp.maximum(h, 0.0)                                   # relu
        # Dropout(training=False) is the identity at inference.
        s2 = jnp.dot(h.astype(cd), w2,
                     preferred_element_type=jnp.float32)          # (N, O) f32
        slabs.append(s2.astype(cd))
    if Op > B * O:
        # Zero lane padding -> the final store below is a full lane-dense slab.
        # These columns are sliced off by the consumer, never fed back.
        slabs.append(jnp.zeros((N, Op - B * O), cd))
    s2_packed = jnp.concatenate(slabs, axis=-1)                   # (N, Op) cd

    # ---- layer-2 adjacency GEMM: single packed matmul over all batches ----
    y = jnp.dot(a2, s2_packed, preferred_element_type=jnp.float32) + b2
    out_ref[...] = y.astype(out_ref.dtype)


# ---------------------------------------------------------------------------
# One-time parameter / graph packing.  Run OUTSIDE the per-step hot path.
# ---------------------------------------------------------------------------
def prepare_gcn(params, adj, batch_size, compute_dtype=jnp.bfloat16):
    w1, b1, m1 = params["w1"], params["b1"], params["m1"]
    w2, b2, m2 = params["w2"], params["b2"], params["m2"]
    B = int(batch_size)
    N = adj.shape[0]
    F, H = w1.shape
    O = w2.shape[1]
    Op = _round_up(B * O, 128)
    L = max(_round_up(H, 128), Op)

    b_packed = jnp.zeros((2, L), jnp.float32)
    b_packed = b_packed.at[0, :H].set(b1.reshape(-1).astype(jnp.float32))
    b_packed = b_packed.at[1, :B * O].set(
        jnp.tile(b2.reshape(-1), B).astype(jnp.float32))

    arrays = {
        "a1": (adj * m1).astype(compute_dtype),   # batch-invariant fusion, once
        "a2": (adj * m2).astype(compute_dtype),
        "w1": w1.astype(compute_dtype),
        "w2": w2.astype(compute_dtype),
        "b": b_packed,
    }
    meta = {"B": B, "N": N, "F": F, "H": H, "O": O, "Op": Op}
    return {"arrays": arrays, "meta": meta}


# ---------------------------------------------------------------------------
# Hot path: one fused pallas_call, nothing else.
# ---------------------------------------------------------------------------
def gcn_forward_packed(x, prep):
    """x: (B, N, F) f32.  Returns lane-dense packed (N, Op) f32,
    where column index = b*O + o (padded tail columns are zero)."""
    m = prep["meta"]
    a = prep["arrays"]
    B, N, F, H, O, Op = m["B"], m["N"], m["F"], m["H"], m["O"], m["Op"]
    assert x.shape == (B, N, F), (x.shape, (B, N, F))

    flops = 2 * B * N * (F * H + N * H + H * O + N * O)
    bytes_accessed = (
        x.size * x.dtype.itemsize
        + sum(v.size * v.dtype.itemsize for v in a.values())
        + N * Op * 4)

    kernel = functools.partial(gcn_kernel, B=B, H=H, O=O, Op=Op)
    return pl.pallas_call(
        kernel,
        out_shape=jax.ShapeDtypeStruct((N, Op), jnp.float32),
        cost_estimate=pl.CostEstimate(
            flops=flops, transcendentals=0, bytes_accessed=bytes_accessed),
    )(x, a["a1"], a["a2"], a["w1"], a["w2"], a["b"])


def gcn_forward(x, prep):
    """Convenience wrapper producing the PyTorch (B, N, O) layout.  Consumers
    that can work directly on the packed (N, B*O) slab should call
    gcn_forward_packed() and skip this relayout copy."""
    m = prep["meta"]
    B, N, O = m["B"], m["N"], m["O"]
    out = gcn_forward_packed(x, prep)
    return jnp.transpose(out[:, : B * O].reshape(N, B, O), (1, 0, 2))


# ---------------------------------------------------------------------------
# Parameter init matching GraphConvolutionLayer.reset_parameters, and a
# pure-JAX reference of the PyTorch forward (eval mode).
# ---------------------------------------------------------------------------
def init_params(key, nfeat, nhid, nout, num_nodes):
    k1, k2, k3, k4 = jax.random.split(key, 4)
    stdv1 = 1.0 / math.sqrt(nhid)
    stdv2 = 1.0 / math.sqrt(nout)
    return {
        "w1": jax.random.uniform(k1, (nfeat, nhid), jnp.float32, -stdv1, stdv1),
        "b1": jax.random.uniform(k2, (1, nhid), jnp.float32, -stdv1, stdv1),
        "m1": jnp.ones((num_nodes, num_nodes), jnp.float32),
        "w2": jax.random.uniform(k3, (nhid, nout), jnp.float32, -stdv2, stdv2),
        "b2": jax.random.uniform(k4, (1, nout), jnp.float32, -stdv2, stdv2),
        "m2": jnp.ones((num_nodes, num_nodes), jnp.float32),
    }


def gcn_reference(x, adj, params):
    s1 = jnp.einsum("bnc,cd->bnd", x, params["w1"])
    h = jnp.einsum("mn,bnd->bmd", adj * params["m1"], s1) + params["b1"][0]
    h = jnp.maximum(h, 0.0)
    s2 = jnp.einsum("bnc,cd->bnd", h, params["w2"])
    return jnp.einsum("mn,bnd->bmd", adj * params["m2"], s2) + params["b2"][0]


if __name__ == "__main__":
    B, N = 2, 16          # batch, num_nodes
    nfeat, nhid, nout = 32, 64, 32
    dropout_p = 0.5       # unused at inference

    key = jax.random.PRNGKey(0)
    kx, ka, kp = jax.random.split(key, 3)

    x = jax.random.normal(kx, (B, N, nfeat), jnp.float32)
    adj = jax.random.uniform(ka, (N, N), jnp.float32)
    params = init_params(kp, nfeat, nhid, nout, N)

    ref = gcn_reference(x, adj, params)

    # f32 compute path (tight check vs. reference).
    prep_f32 = prepare_gcn(params, adj, B, compute_dtype=jnp.float32)
    out = jax.block_until_ready(gcn_forward(x, prep_f32))
    assert out.shape == (B, N, nout)
    assert jnp.allclose(out, ref, atol=1e-4, rtol=1e-4), "f32 mismatch vs reference"

    # bf16 MXU path (default serving path on v5e / v6e / v7x): f32 accumulation,
    # loose tolerance.
    prep_bf16 = prepare_gcn(params, adj, B, compute_dtype=jnp.bfloat16)
    out_bf16 = jax.block_until_ready(gcn_forward(x, prep_bf16))
    assert out_bf16.shape == (B, N, nout)
    assert jnp.allclose(out_bf16, ref, atol=0.25, rtol=0.05), "bf16 mismatch vs reference"

    print("KERNEL_OK")
</pallas_src>

<mosaic_0001>
module attributes {stable_mosaic.version = 11 : i64} {
  func.func @gcn_kernel(%arg0: memref<2x16x32xf32, #tpu.memory_space<vmem>>, %arg1: memref<16x16xf32, #tpu.memory_space<vmem>>, %arg2: memref<16x16xf32, #tpu.memory_space<vmem>>, %arg3: memref<32x64xf32, #tpu.memory_space<vmem>>, %arg4: memref<64x32xf32, #tpu.memory_space<vmem>>, %arg5: memref<2x128xf32, #tpu.memory_space<vmem>>, %arg6: memref<16x128xf32, #tpu.memory_space<vmem>>) attributes {dimension_semantics = [], scalar_prefetch = 0 : i64, scratch_operands = 0 : i64, tpu.core_type = #tpu.core_type<tc>} {
    %c0 = arith.constant 0 : index
    %c0_0 = arith.constant 0 : index
    %0 = vector.load %arg1[%c0, %c0_0] : memref<16x16xf32, #tpu.memory_space<vmem>>, vector<16x16xf32>
    %c0_1 = arith.constant 0 : index
    %c0_2 = arith.constant 0 : index
    %1 = vector.load %arg2[%c0_1, %c0_2] : memref<16x16xf32, #tpu.memory_space<vmem>>, vector<16x16xf32>
    %c0_3 = arith.constant 0 : index
    %c0_4 = arith.constant 0 : index
    %2 = vector.load %arg3[%c0_3, %c0_4] : memref<32x64xf32, #tpu.memory_space<vmem>>, vector<32x64xf32>
    %c0_5 = arith.constant 0 : index
    %c0_6 = arith.constant 0 : index
    %3 = vector.load %arg4[%c0_5, %c0_6] : memref<64x32xf32, #tpu.memory_space<vmem>>, vector<64x32xf32>
    %c0_7 = arith.constant 0 : index
    %c0_8 = arith.constant 0 : index
    %4 = vector.load %arg5[%c0_7, %c0_8] : memref<2x128xf32, #tpu.memory_space<vmem>>, vector<1x64xf32>
    %c1 = arith.constant 1 : index
    %c0_9 = arith.constant 0 : index
    %5 = vector.load %arg5[%c1, %c0_9] : memref<2x128xf32, #tpu.memory_space<vmem>>, vector<1x128xf32>
    %c0_10 = arith.constant 0 : index
    %c0_11 = arith.constant 0 : index
    %c0_12 = arith.constant 0 : index
    %6 = vector.load %arg0[%c0_10, %c0_11, %c0_12] : memref<2x16x32xf32, #tpu.memory_space<vmem>>, vector<1x16x32xf32>
    %7 = vector.shape_cast %6 : vector<1x16x32xf32> to vector<16x32xf32>
    %cst = arith.constant dense<0.000000e+00> : vector<16x64xf32>
    %8 = tpu.matmul %7, %2, %cst {dimension_numbers = #tpu.dot_dimension_numbers<[1], [0], [0], [1], [0, 0, 1, 1], [], []>} : vector<16x32xf32>, vector<32x64xf32>, vector<16x64xf32> -> vector<16x64xf32>
    %cst_13 = arith.constant dense<0.000000e+00> : vector<16x64xf32>
    %9 = tpu.matmul %0, %8, %cst_13 {dimension_numbers = #tpu.dot_dimension_numbers<[1], [0], [0], [1], [0, 0, 1, 1], [], []>} : vector<16x16xf32>, vector<16x64xf32>, vector<16x64xf32> -> vector<16x64xf32>
    %10 = vector.broadcast %4 : vector<1x64xf32> to vector<16x64xf32>
    %11 = arith.addf %9, %10 : vector<16x64xf32>
    %cst_14 = arith.constant 0.000000e+00 : f32
    %12 = vector.broadcast %cst_14 : f32 to vector<16x64xf32>
    %13 = arith.maximumf %11, %12 : vector<16x64xf32>
    %cst_15 = arith.constant dense<0.000000e+00> : vector<16x32xf32>
    %14 = tpu.matmul %13, %3, %cst_15 {dimension_numbers = #tpu.dot_dimension_numbers<[1], [0], [0], [1], [0, 0, 1, 1], [], []>} : vector<16x64xf32>, vector<64x32xf32>, vector<16x32xf32> -> vector<16x32xf32>
    %c1_16 = arith.constant 1 : index
    %c0_17 = arith.constant 0 : index
    %c0_18 = arith.constant 0 : index
    %15 = vector.load %arg0[%c1_16, %c0_17, %c0_18] : memref<2x16x32xf32, #tpu.memory_space<vmem>>, vector<1x16x32xf32>
    %16 = vector.shape_cast %15 : vector<1x16x32xf32> to vector<16x32xf32>
    %cst_19 = arith.constant dense<0.000000e+00> : vector<16x64xf32>
    %17 = tpu.matmul %16, %2, %cst_19 {dimension_numbers = #tpu.dot_dimension_numbers<[1], [0], [0], [1], [0, 0, 1, 1], [], []>} : vector<16x32xf32>, vector<32x64xf32>, vector<16x64xf32> -> vector<16x64xf32>
    %cst_20 = arith.constant dense<0.000000e+00> : vector<16x64xf32>
    %18 = tpu.matmul %0, %17, %cst_20 {dimension_numbers = #tpu.dot_dimension_numbers<[1], [0], [0], [1], [0, 0, 1, 1], [], []>} : vector<16x16xf32>, vector<16x64xf32>, vector<16x64xf32> -> vector<16x64xf32>
    %19 = vector.broadcast %4 : vector<1x64xf32> to vector<16x64xf32>
    %20 = arith.addf %18, %19 : vector<16x64xf32>
    %cst_21 = arith.constant 0.000000e+00 : f32
    %21 = vector.broadcast %cst_21 : f32 to vector<16x64xf32>
    %22 = arith.maximumf %20, %21 : vector<16x64xf32>
    %cst_22 = arith.constant dense<0.000000e+00> : vector<16x32xf32>
    %23 = tpu.matmul %22, %3, %cst_22 {dimension_numbers = #tpu.dot_dimension_numbers<[1], [0], [0], [1], [0, 0, 1, 1], [], []>} : vector<16x64xf32>, vector<64x32xf32>, vector<16x32xf32> -> vector<16x32xf32>
    %cst_23 = arith.constant 0.000000e+00 : f32
    %24 = vector.broadcast %cst_23 : f32 to vector<16x64xf32>
    %25 = tpu.concatenate %14, %23, %24 in 1 : vector<16x32xf32>, vector<16x32xf32>, vector<16x64xf32> -> vector<16x128xf32>
    %cst_24 = arith.constant dense<0.000000e+00> : vector<16x128xf32>
    %26 = tpu.matmul %1, %25, %cst_24 {dimension_numbers = #tpu.dot_dimension_numbers<[1], [0], [0], [1], [0, 0, 1, 1], [], []>} : vector<16x16xf32>, vector<16x128xf32>, vector<16x128xf32> -> vector<16x128xf32>
    %27 = vector.broadcast %5 : vector<1x128xf32> to vector<16x128xf32>
    %28 = arith.addf %26, %27 : vector<16x128xf32>
    %c0_25 = arith.constant 0 : index
    %c0_26 = arith.constant 0 : index
    %29 = vector.load %arg6[%c0_25, %c0_26] : memref<16x128xf32, #tpu.memory_space<vmem>>, vector<16x128xf32>
    tpu.vector_store %arg6[%c0_25, %c0_26], %28 {strides = array<i32>} : memref<16x128xf32, #tpu.memory_space<vmem>>, vector<16x128xf32>,
    return
  }
}

</mosaic_0001>

<llo_original>
// kernel: tpu_custom_call.1
$region0: #{tpu_custom_call.1}
  #allocation0 [shape = 'u32[]', space=smem, size = 0x4, offset = 0x4, fixed_abs, tag = 'smem constant byte address 0x4 - core index']
  #allocation1 [shape = 'u32[72,128]{1,0:T(1,128)}', space=vmem, size = 0x9000, scoped, tag = 'internal scratch']
  %s0 = inlined_call_operand.vmem [shape: f32[2,16,32], index: 0, kind: input, shape index: {}]
  %s1 = inlined_call_operand.vmem [shape: f32[16,16], index: 1, kind: input, shape index: {}]
  %s2 = inlined_call_operand.vmem [shape: f32[16,16], index: 2, kind: input, shape index: {}]
  %s3 = inlined_call_operand.vmem [shape: f32[32,64], index: 3, kind: input, shape index: {}]
  %s4 = inlined_call_operand.vmem [shape: f32[64,32], index: 4, kind: input, shape index: {}]
  %s5 = inlined_call_operand.vmem [shape: f32[2,128], index: 5, kind: input, shape index: {}]
  %s6 = inlined_call_operand.hbm [shape: f32[16,128], index: 6, kind: output, shape index: {}]
  %s7 = sld [smem:[#allocation0]]
  $region34: #{tpu_custom_call.1} parent=0
    _
  %s9 = ssub.s32 1, %s7
  %s10 = scalar_select 0, %s9, %s7
  $region1: #{tpu_custom_call.1} parent=0
    #allocation2 [shape = 'u8[8192]{0}', space=vmem, size = 0x2000, scoped, tag = 'output window, operand 0, single buffered']
    #allocation3 [shape = 's32[1]{0}', space=sflag, size = 0x4, scoped, tag = 'scoped memory for tpu_custom_call.1']
    %11 = vsyncpa [#allocation3], 0
    // Predicated region
    $region2: #{tpu_custom_call.1} parent=1 // pred_check
      _
    $region3: #{tpu_custom_call.1} parent=1 // pred_check_branch
      %13 = sbr.rel (0) target = $region5
    $region4: #{tpu_custom_call.1} parent=1 // pred_region
      _
    $region5: #{tpu_custom_call.1} parent=1 // pred_fallthru
      _
    // Predicated region
    $region6: #{tpu_custom_call.1} parent=1 // pred_check
      _
    $region7: #{tpu_custom_call.1} parent=1 // pred_check_branch
      %15 = sbr.rel (0) target = $region9
    $region8: #{tpu_custom_call.1} parent=1 // pred_region
      _
    $region9: #{tpu_custom_call.1} parent=1 // pred_fallthru
      _
    // Predicated region
    $region10: #{tpu_custom_call.1} parent=1 // pred_check
      _
    $region11: #{tpu_custom_call.1} parent=1 // pred_check_branch
      %17 = sbr.rel (0) target = $region13
    $region12: #{tpu_custom_call.1} parent=1 // pred_region
      _
    $region13: #{tpu_custom_call.1} parent=1 // pred_fallthru
      _
    // Predicated region
    $region14: #{tpu_custom_call.1} parent=1 // pred_check
      _
    $region15: #{tpu_custom_call.1} parent=1 // pred_check_branch
      %19 = sbr.rel (0) target = $region17
    $region16: #{tpu_custom_call.1} parent=1 // pred_region
      _
    $region17: #{tpu_custom_call.1} parent=1 // pred_fallthru
      _
    // Predicated region
    $region18: #{tpu_custom_call.1} parent=1 // pred_check
      _
    $region19: #{tpu_custom_call.1} parent=1 // pred_check_branch
      %21 = sbr.rel (0) target = $region21
    $region20: #{tpu_custom_call.1} parent=1 // pred_region
      _
    $region21: #{tpu_custom_call.1} parent=1 // pred_fallthru
      _
    // Predicated region
    $region22: #{tpu_custom_call.1} parent=1 // pred_check
      _
    $region23: #{tpu_custom_call.1} parent=1 // pred_check_branch
      %23 = sbr.rel (0) target = $region25
    $region24: #{tpu_custom_call.1} parent=1 // pred_region
      _
    $region25: #{tpu_custom_call.1} parent=1 // pred_fallthru
      _
    %v24 = vld [vmem:[%s1] sm:$0xff]
    %v25 = vld [vmem:[%s1 + $0x8] sm:$0xff]
    %v26 = vld [vmem:[%s2] sm:$0xff]
    %v27 = vld [vmem:[%s2 + $0x8] sm:$0xff]
    %v28 = vld [vmem:[%s3] sm:$0xff]
    %v29 = vld [vmem:[%s3 + $0x8] sm:$0xff]
    %v30 = vld [vmem:[%s3 + $0x10] sm:$0xff]
    %v31 = vld [vmem:[%s3 + $0x18] sm:$0xff]
    %v32 = vld [vmem:[%s4] sm:$0xff]
    %v33 = vld [vmem:[%s4 + $0x8] sm:$0xff]
    %v34 = vld [vmem:[%s4 + $0x10] sm:$0xff]
    %v35 = vld [vmem:[%s4 + $0x18] sm:$0xff]
    %v36 = vld [vmem:[%s4 + $0x20] sm:$0xff]
    %v37 = vld [vmem:[%s4 + $0x28] sm:$0xff]
    %v38 = vld [vmem:[%s4 + $0x30] sm:$0xff]
    %v39 = vld [vmem:[%s4 + $0x38] sm:$0xff]
    %v40 = vld [vmem:[%s5] sm:$0x1]
    %v41 = vld [vmem:[%s5 + $0x1] sm:$0x1]
    %v42 = vld [vmem:[%s0] sm:$0xff]
    %v43 = vld [vmem:[%s0 + $0x8] sm:$0xff]
    %vm44 = vcmask 261120
    %v46 = vsel %vm44, %v42, 0
    %v49 = vsel %vm44, %v43, 0
    %51 = vmatpush.msra.mxu0 0.0
    %52 = vmatpush.msra.mxu0 0.0
    %53 = vmatpush.msra.mxu0 0.0
    %54 = vmatpush.msra.mxu0 0.0
    %55 = vmatpush.msra.mxu0 0.0
    %56 = vmatpush.msra.mxu0 0.0
    %57 = vmatpush.msra.mxu0 0.0
    %58 = vmatpush.msra.mxu0 0.0
    %59 = vmatpush.msra.mxu0 0.0
    %60 = vmatpush.msra.mxu0 0.0
    %61 = vmatpush.msra.mxu0 0.0
    %62 = vmatpush.msra.mxu0 0.0
    %63 = vmatpush.msra.mxu0 %v31
    %64 = vmatpush.msra.mxu0 %v30
    %65 = vmatpush.msra.mxu0 %v29
    %66 = vmatpush.msra.mxu0 %v28
    %67 = vmatmul.f32.gmra.mxu0 %v46
    %v68 = vpop.f32.mrf.mxu0
    %v69 = vadd.f32 0.0, %v68
    %70 = vmatmul.f32.gmra.mxu0 %v49
    %v71 = vpop.f32.mrf.mxu0
    %v72 = vadd.f32 0.0, %v71
    %73 = vdwg.mxu0
    %v74 = vperm.slane %v40, 0
    %vm75 = vcmask 130048
    %v77 = vsel %vm75, %v24, 0
    %v80 = vsel %vm75, %v25, 0
    %82 = vmatpush.msra.mxu0 0.0
    %83 = vmatpush.msra.mxu0 0.0
    %84 = vmatpush.msra.mxu0 0.0
    %85 = vmatpush.msra.mxu0 0.0
    %86 = vmatpush.msra.mxu0 0.0
    %87 = vmatpush.msra.mxu0 0.0
    %88 = vmatpush.msra.mxu0 0.0
    %89 = vmatpush.msra.mxu0 0.0
    %90 = vmatpush.msra.mxu0 0.0
    %91 = vmatpush.msra.mxu0 0.0
    %92 = vmatpush.msra.mxu0 0.0
    %93 = vmatpush.msra.mxu0 0.0
    %94 = vmatpush.msra.mxu0 0.0
    %95 = vmatpush.msra.mxu0 0.0
    %96 = vmatpush.msra.mxu0 %v72
    %97 = vmatpush.msra.mxu0 %v69
    %98 = vmatmul.f32.gmra.mxu0 %v77
    %v99 = vpop.f32.mrf.mxu0
    %v100 = vadd.f32 %v74, %v99
    %101 = vmatmul.f32.gmra.mxu0 %v80
    %v102 = vpop.f32.mrf.mxu0
    %v103 = vadd.f32 %v74, %v102
    %104 = vdwg.mxu0
    %v105 = vmax.f32 %v100, 0.0
    %v106 = vmax.f32 %v103, 0.0
    %vm107 = vcmask 523264
    %v109 = vsel %vm107, %v105, 0
    %v112 = vsel %vm107, %v106, 0
    %114 = vmatpush.msra.mxu0 0.0
    %115 = vmatpush.msra.mxu0 0.0
    %116 = vmatpush.msra.mxu0 0.0
    %117 = vmatpush.msra.mxu0 0.0
    %118 = vmatpush.msra.mxu0 0.0
    %119 = vmatpush.msra.mxu0 0.0
    %120 = vmatpush.msra.mxu0 0.0
    %121 = vmatpush.msra.mxu0 0.0
    %122 = vmatpush.msra.mxu0 %v39
    %123 = vmatpush.msra.mxu0 %v38
    %124 = vmatpush.msra.mxu0 %v37
    %125 = vmatpush.msra.mxu0 %v36
    %126 = vmatpush.msra.mxu0 %v35
    %127 = vmatpush.msra.mxu0 %v34
    %128 = vmatpush.msra.mxu0 %v33
    %129 = vmatpush.msra.mxu0 %v32
    %130 = vmatmul.f32.gmra.mxu0 %v109
    %v131 = vpop.f32.mrf.mxu0
    %v132 = vadd.f32 0.0, %v131
    %133 = vmatmul.f32.gmra.mxu0 %v112
    %v134 = vpop.f32.mrf.mxu0
    %v135 = vadd.f32 0.0, %v134
    %136 = vdwg.mxu0
    %s137 = scalar_lea.vmem %s0, 16
    %v138 = vld [vmem:[%s137] sm:$0xff]
    %v139 = vld [vmem:[%s137 + $0x8] sm:$0xff]
    %v141 = vsel %vm44, %v138, 0
    %v144 = vsel %vm44, %v139, 0
    %146 = vmatpush.msra.mxu0 0.0
    %147 = vmatpush.msra.mxu0 0.0
    %148 = vmatpush.msra.mxu0 0.0
    %149 = vmatpush.msra.mxu0 0.0
    %150 = vmatpush.msra.mxu0 0.0
    %151 = vmatpush.msra.mxu0 0.0
    %152 = vmatpush.msra.mxu0 0.0
    %153 = vmatpush.msra.mxu0 0.0
    %154 = vmatpush.msra.mxu0 0.0
    %155 = vmatpush.msra.mxu0 0.0
    %156 = vmatpush.msra.mxu0 0.0
    %157 = vmatpush.msra.mxu0 0.0
    %158 = vmatpush.msra.mxu0 %v31
    %159 = vmatpush.msra.mxu0 %v30
    %160 = vmatpush.msra.mxu0 %v29
    %161 = vmatpush.msra.mxu0 %v28
    %162 = vmatmul.f32.gmra.mxu0 %v141
    %v163 = vpop.f32.mrf.mxu0
    %v164 = vadd.f32 0.0, %v163
    %165 = vmatmul.f32.gmra.mxu0 %v144
    %v166 = vpop.f32.mrf.mxu0
    %v167 = vadd.f32 0.0, %v166
    %168 = vdwg.mxu0
    %169 = vmatpush.msra.mxu0 0.0
    %170 = vmatpush.msra.mxu0 0.0
    %171 = vmatpush.msra.mxu0 0.0
    %172 = vmatpush.msra.mxu0 0.0
    %173 = vmatpush.msra.mxu0 0.0
    %174 = vmatpush.msra.mxu0 0.0
    %175 = vmatpush.msra.mxu0 0.0
    %176 = vmatpush.msra.mxu0 0.0
    %177 = vmatpush.msra.mxu0 0.0
    %178 = vmatpush.msra.mxu0 0.0
    %179 = vmatpush.msra.mxu0 0.0
    %180 = vmatpush.msra.mxu0 0.0
    %181 = vmatpush.msra.mxu0 0.0
    %182 = vmatpush.msra.mxu0 0.0
    %183 = vmatpush.msra.mxu0 %v167
    %184 = vmatpush.msra.mxu0 %v164
    %185 = vmatmul.f32.gmra.mxu0 %v77
    %v186 = vpop.f32.mrf.mxu0
    %v187 = vadd.f32 %v74, %v186
    %188 = vmatmul.f32.gmra.mxu0 %v80
    %v189 = vpop.f32.mrf.mxu0
    %v190 = vadd.f32 %v74, %v189
    %191 = vdwg.mxu0
    %v192 = vmax.f32 %v187, 0.0
    %v193 = vmax.f32 %v190, 0.0
    %v195 = vsel %vm107, %v192, 0
    %v198 = vsel %vm107, %v193, 0
    %200 = vmatpush.msra.mxu0 0.0
    %201 = vmatpush.msra.mxu0 0.0
    %202 = vmatpush.msra.mxu0 0.0
    %203 = vmatpush.msra.mxu0 0.0
    %204 = vmatpush.msra.mxu0 0.0
    %205 = vmatpush.msra.mxu0 0.0
    %206 = vmatpush.msra.mxu0 0.0
    %207 = vmatpush.msra.mxu0 0.0
    %208 = vmatpush.msra.mxu0 %v39
    %209 = vmatpush.msra.mxu0 %v38
    %210 = vmatpush.msra.mxu0 %v37
    %211 = vmatpush.msra.mxu0 %v36
    %212 = vmatpush.msra.mxu0 %v35
    %213 = vmatpush.msra.mxu0 %v34
    %214 = vmatpush.msra.mxu0 %v33
    %215 = vmatpush.msra.mxu0 %v32
    %216 = vmatmul.f32.gmra.mxu0 %v195
    %v217 = vpop.f32.mrf.mxu0
    %v218 = vadd.f32 0.0, %v217
    %219 = vmatmul.f32.gmra.mxu0 %v198
    %v220 = vpop.f32.mrf.mxu0
    %v221 = vadd.f32 0.0, %v220
    %222 = vdwg.mxu0
    %225 = vrot.lane.b32.xlu0 %v218, 32
    %v226 = vpop.permute.xlu0 %225
    %227 = vrot.lane.b32.xlu0 %v221, 32
    %v228 = vpop.permute.xlu0 %227
    %v231 = vsel %vm44, %v132, %v226
    %v232 = vsel %vm44, %v135, %v228
    %v233 = vsel %vm107, %v231, 0.0
    %v234 = vsel %vm107, %v232, 0.0
    %v235 = vperm.slane %v41, 0
    %v237 = vsel %vm75, %v26, 0
    %v240 = vsel %vm75, %v27, 0
    %242 = vmatpush.msra.mxu0 0.0
    %243 = vmatpush.msra.mxu0 0.0
    %244 = vmatpush.msra.mxu0 0.0
    %245 = vmatpush.msra.mxu0 0.0
    %246 = vmatpush.msra.mxu0 0.0
    %247 = vmatpush.msra.mxu0 0.0
    %248 = vmatpush.msra.mxu0 0.0
    %249 = vmatpush.msra.mxu0 0.0
    %250 = vmatpush.msra.mxu0 0.0
    %251 = vmatpush.msra.mxu0 0.0
    %252 = vmatpush.msra.mxu0 0.0
    %253 = vmatpush.msra.mxu0 0.0
    %254 = vmatpush.msra.mxu0 0.0
    %255 = vmatpush.msra.mxu0 0.0
    %256 = vmatpush.msra.mxu0 %v234
    %257 = vmatpush.msra.mxu0 %v233
    %258 = vmatmul.f32.gmra.mxu0 %v237
    %v259 = vpop.f32.mrf.mxu0
    %v260 = vadd.f32 %v235, %v259
    %261 = vmatmul.f32.gmra.mxu0 %v240
    %v262 = vpop.f32.mrf.mxu0
    %v263 = vadd.f32 %v235, %v262
    %264 = vdwg.mxu0
    %265 = vst [vmem:[#allocation2] sm:$0xff] %v260
    %266 = vst [vmem:[#allocation2 + $0x8] sm:$0xff] %v263
    // Predicated region
    $region26: #{tpu_custom_call.1} parent=1 // pred_check
      _
    $region27: #{tpu_custom_call.1} parent=1 // pred_check_branch
      %268 = sbr.rel (0) target = $region29
    $region28: #{tpu_custom_call.1} parent=1 // pred_region
      %270 = vsyncadd [#allocation3], 0
      %s271 = sshll.u32 [#allocation2], 4
      %s272 = int_to_ptr.vmem [resolvable:$true] %s271
      %s273 = sshll.u32 %s6, 4
      %s274 = int_to_ptr.hbm [resolvable:$true] %s273
      %279 = dma.vmem_to_hbm [thread:$0]  %s272, 256, %s274, [#allocation3], 128, 128, 8
    $region29: #{tpu_custom_call.1} parent=1 // pred_fallthru
      _
    // Predicated region
    $region30: #{tpu_custom_call.1} parent=1 // pred_check
      _
    $region31: #{tpu_custom_call.1} parent=1 // pred_check_branch
      %281 = sbr.rel (0) target = $region33
    $region32: #{tpu_custom_call.1} parent=1 // pred_region
      %283 = dma.done [#allocation3], 256
    $region33: #{tpu_custom_call.1} parent=1 // pred_fallthru
      _
    %284 = vsyncpa [#allocation3], 1

</llo_original>
